<compile_context>
chip_gen: v5e
topology: v5e:2x2
jax: 0.10.0
libtpu: 0.0.40
codegen_flags: <defaults>
</compile_context>

<pallas_src>
import math

import jax
import jax.numpy as jnp
from jax import lax
from jax.experimental import pallas as pl
from jax.experimental.pallas import tpu as pltpu

_EPS = 1e-12  # matches torch.nn.functional.normalize default eps


def _round_up(x: int, m: int) -> int:
    return (x + m - 1) // m * m


def _arc_margin_kernel(x_ref, wt_ref, o_ref):
    # x_ref:  (tb, D)  float32 (un-normalized features tile)
    # wt_ref: (D, tn)  compute dtype (un-normalized, transposed weight tile)
    # o_ref:  (tb, tn) float32 cosine tile
    x = x_ref[...]                                   # (tb, D) f32
    w = wt_ref[...]                                  # (D, tn)

    # Row sum-of-squares of x in f32.
    x_ss = jnp.sum(x * x, axis=-1, keepdims=True)    # (tb, 1)
    inv_x = lax.rsqrt(jnp.maximum(x_ss, _EPS * _EPS))  # == 1/max(||x||, eps)

    # Column sum-of-squares of the weight tile (accumulate in f32).
    w32 = w.astype(jnp.float32)
    w_ss = jnp.sum(w32 * w32, axis=0, keepdims=True)   # (1, tn)
    inv_w = lax.rsqrt(jnp.maximum(w_ss, _EPS * _EPS))  # == 1/max(||w||, eps)

    # Un-normalized matmul on the MXU (bf16 operands, f32 accumulate),
    # then scale the output tile by the two inverse norms.
    acc = jnp.dot(x.astype(w.dtype), w,
                  preferred_element_type=jnp.float32)  # (tb, tn)
    o_ref[...] = (acc * inv_x * inv_w).astype(o_ref.dtype)


def arc_margin_product(features: jax.Array,
                       weight: jax.Array,
                       *,
                       compute_dtype=jnp.bfloat16,
                       tb_max: int = 256,
                       tn_max: int = 512) -> jax.Array:
    """features: (B, D), weight: (N, D)  ->  cosine: (B, N) float32."""
    B, D = features.shape
    N, D2 = weight.shape
    assert D == D2, "in_features mismatch"

    # Tile sizes: B-tile multiple of 8, N-tile multiple of 128 (lane-dense
    # output stores). Conservative caps keep double-buffered tiles well under
    # the v7x 64 MiB VMEM budget.
    tb = min(tb_max, _round_up(B, 8))
    tn = min(tn_max, _round_up(N, 128))
    Bp = _round_up(B, tb)
    Np = _round_up(N, tn)

    x = features.astype(jnp.float32)
    if Bp != B:
        x = jnp.pad(x, ((0, Bp - B), (0, 0)))

    # One-time parameter prep: transpose to (D, N) and narrow to the matmul
    # dtype so the dominant (weight) HBM stream is halved.
    wt = weight.astype(compute_dtype).T
    if Np != N:
        wt = jnp.pad(wt, ((0, 0), (0, Np - N)))

    grid = (Bp // tb, Np // tn)
    w_bytes = jnp.dtype(compute_dtype).itemsize

    out = pl.pallas_call(
        _arc_margin_kernel,
        out_shape=jax.ShapeDtypeStruct((Bp, Np), jnp.float32),
        grid_spec=pltpu.PrefetchScalarGridSpec(
            num_scalar_prefetch=0,
            grid=grid,
            in_specs=[
                pl.BlockSpec((tb, D), lambda i, j: (i, 0)),
                pl.BlockSpec((D, tn), lambda i, j: (0, j)),
            ],
            out_specs=pl.BlockSpec((tb, tn), lambda i, j: (i, j)),
        ),
        compiler_params=pltpu.CompilerParams(
            dimension_semantics=("parallel", "parallel"),
        ),
        cost_estimate=pl.CostEstimate(
            flops=2 * Bp * Np * D,
            transcendentals=Bp * (Np // tn) + Np * (Bp // tb),
            bytes_accessed=(Bp * D * 4 * (Np // tn)
                            + D * Np * w_bytes
                            + Bp * Np * 4),
        ),
    )(x, wt)

    return out[:B, :N]


def init_weight(key, in_features: int, out_features: int) -> jax.Array:
    # Matches reset_parameters(): uniform_(-stdv, stdv), stdv = 1/sqrt(in_features)
    stdv = 1.0 / math.sqrt(in_features)
    return jax.random.uniform(
        key, (out_features, in_features), dtype=jnp.float32,
        minval=-stdv, maxval=stdv,
    )


def _reference(features, weight):
    xn = features / jnp.maximum(
        jnp.linalg.norm(features, axis=1, keepdims=True), _EPS)
    wn = weight / jnp.maximum(
        jnp.linalg.norm(weight, axis=1, keepdims=True), _EPS)
    return xn @ wn.T


if __name__ == "__main__":
    key = jax.random.PRNGKey(0)

    # --- small shape consistent with the module (B=8, D=32, N=16) ---
    B, D, N = 8, 32, 16
    k_x, k_w, key = jax.random.split(key, 3)
    features = jax.random.normal(k_x, (B, D), dtype=jnp.float32)
    weight = init_weight(k_w, D, N)

    ref = _reference(features, weight)

    # f32 path: validates semantics tightly against the reference.
    out_f32 = arc_margin_product(features, weight, compute_dtype=jnp.float32)
    jax.block_until_ready(out_f32)
    assert out_f32.shape == (B, N)
    assert jnp.allclose(out_f32, ref, atol=1e-5, rtol=1e-5), "f32 mismatch"

    # default bf16 path (MXU-native, weight streamed as bf16).
    out_bf16 = arc_margin_product(features, weight)
    jax.block_until_ready(out_bf16)
    assert out_bf16.shape == (B, N)
    assert jnp.allclose(out_bf16, ref, atol=2.5e-2, rtol=2.5e-2), "bf16 mismatch"

    # --- a slightly larger, non-divisible shape to exercise padding + tiling ---
    B2, D2, N2 = 24, 128, 640
    k_x2, k_w2, _ = jax.random.split(key, 3)
    features2 = jax.random.normal(k_x2, (B2, D2), dtype=jnp.float32)
    weight2 = init_weight(k_w2, D2, N2)
    ref2 = _reference(features2, weight2)

    out2 = arc_margin_product(features2, weight2)
    jax.block_until_ready(out2)
    assert out2.shape == (B2, N2)
    assert jnp.allclose(out2, ref2, atol=2.5e-2, rtol=2.5e-2), "tiled bf16 mismatch"

    out2_f32 = arc_margin_product(features2, weight2, compute_dtype=jnp.float32)
    jax.block_until_ready(out2_f32)
    assert jnp.allclose(out2_f32, ref2, atol=1e-5, rtol=1e-5), "tiled f32 mismatch"

    print("KERNEL_OK")
</pallas_src>

<mosaic_0001>
module attributes {stable_mosaic.version = 11 : i64} {
  func.func @_arc_margin_kernel(%arg0: i32, %arg1: i32, %arg2: memref<8x32xf32, #tpu.memory_space<vmem>>, %arg3: memref<32x128xf32, #tpu.memory_space<vmem>>, %arg4: memref<8x128xf32, #tpu.memory_space<vmem>>) attributes {dimension_semantics = [#tpu.dimension_semantics<parallel>, #tpu.dimension_semantics<parallel>], iteration_bounds = array<i64: 1, 1>, scalar_prefetch = 0 : i64, scratch_operands = 0 : i64, tpu.core_type = #tpu.core_type<tc>, window_params = [{transform_indices = @transform_0, window_bounds = array<i64: 8, 32>}, {transform_indices = @transform_1, window_bounds = array<i64: 32, 128>}, {transform_indices = @transform_2, window_bounds = array<i64: 8, 128>}]} {
    %c0 = arith.constant 0 : index
    %c0_0 = arith.constant 0 : index
    %0 = vector.load %arg2[%c0, %c0_0] : memref<8x32xf32, #tpu.memory_space<vmem>>, vector<8x32xf32>
    %c0_1 = arith.constant 0 : index
    %c0_2 = arith.constant 0 : index
    %1 = vector.load %arg3[%c0_1, %c0_2] : memref<32x128xf32, #tpu.memory_space<vmem>>, vector<32x128xf32>
    %2 = arith.mulf %0, %0 : vector<8x32xf32>
    %cst = arith.constant dense<0.000000e+00> : vector<8xf32>
    %3 = vector.multi_reduction <add>, %2, %cst [1] : vector<8x32xf32> to vector<8xf32>
    %4 = vector.shape_cast %3 : vector<8xf32> to vector<8x1xf32>
    %cst_3 = arith.constant 1.000000e-24 : f32
    %5 = vector.broadcast %cst_3 : f32 to vector<8x1xf32>
    %6 = arith.maximumf %4, %5 : vector<8x1xf32>
    %7 = math.rsqrt %6 : vector<8x1xf32>
    %8 = arith.mulf %1, %1 : vector<32x128xf32>
    %cst_4 = arith.constant dense<0.000000e+00> : vector<128xf32>
    %9 = vector.multi_reduction <add>, %8, %cst_4 [0] : vector<32x128xf32> to vector<128xf32>
    %10 = vector.shape_cast %9 : vector<128xf32> to vector<1x128xf32>
    %cst_5 = arith.constant 1.000000e-24 : f32
    %11 = vector.broadcast %cst_5 : f32 to vector<1x128xf32>
    %12 = arith.maximumf %10, %11 : vector<1x128xf32>
    %13 = math.rsqrt %12 : vector<1x128xf32>
    %cst_6 = arith.constant dense<0.000000e+00> : vector<8x128xf32>
    %14 = tpu.matmul %0, %1, %cst_6 {dimension_numbers = #tpu.dot_dimension_numbers<[1], [0], [0], [1], [0, 0, 1, 1], [], []>} : vector<8x32xf32>, vector<32x128xf32>, vector<8x128xf32> -> vector<8x128xf32>
    %15 = vector.broadcast %7 : vector<8x1xf32> to vector<8x128xf32>
    %16 = arith.mulf %14, %15 : vector<8x128xf32>
    %17 = vector.broadcast %13 : vector<1x128xf32> to vector<8x128xf32>
    %18 = arith.mulf %16, %17 : vector<8x128xf32>
    %c0_7 = arith.constant 0 : index
    %c0_8 = arith.constant 0 : index
    %19 = vector.load %arg4[%c0_7, %c0_8] : memref<8x128xf32, #tpu.memory_space<vmem>>, vector<8x128xf32>
    tpu.vector_store %arg4[%c0_7, %c0_8], %18 {strides = array<i32>} : memref<8x128xf32, #tpu.memory_space<vmem>>, vector<8x128xf32>,
    return
  }
  func.func @transform_0(%arg0: i32, %arg1: i32) -> (i32, i32) {
    %c0_i32 = arith.constant 0 : i32
    %c0_i32_0 = arith.constant 0 : i32
    return %arg0, %c0_i32 : i32, i32
  }
  func.func @transform_1(%arg0: i32, %arg1: i32) -> (i32, i32) {
    %c0_i32 = arith.constant 0 : i32
    %c0_i32_0 = arith.constant 0 : i32
    return %c0_i32, %arg1 : i32, i32
  }
  func.func @transform_2(%arg0: i32, %arg1: i32) -> (i32, i32) {
    %c0_i32 = arith.constant 0 : i32
    return %arg0, %arg1 : i32, i32
  }
}

</mosaic_0001>

<llo_original>
// kernel: tpu_custom_call.1
$region0: #{tpu_custom_call.1}
  #allocation0 [shape = 'u32[]', space=smem, size = 0x4, offset = 0x4, fixed_abs, tag = 'smem constant byte address 0x4 - core index']
  #allocation1 [shape = 'u32[72,128]{1,0:T(1,128)}', space=vmem, size = 0x9000, scoped, tag = 'internal scratch']
  %s0 = inlined_call_operand.hbm [shape: f32[8,32], index: 0, kind: input, shape index: {}]
  %s1 = inlined_call_operand.hbm [shape: f32[32,128], index: 1, kind: input, shape index: {}]
  %s2 = inlined_call_operand.hbm [shape: f32[8,128], index: 2, kind: output, shape index: {}]
  %s3 = sld [smem:[#allocation0]]
  $region26: #{tpu_custom_call.1} parent=0
    _
  %s5 = ssub.s32 1, %s3
  %s6 = scalar_select 0, %s5, %s3
  $region1: #{tpu_custom_call.1} parent=0
    #allocation2 [shape = 'u8[4096]{0}', space=vmem, size = 0x1000, scoped, tag = 'input window, operand 0, single buffered']
    #allocation3 [shape = 's32[1]{0}', space=sflag, size = 0x4, scoped, tag = 'scoped memory for tpu_custom_call.1']
    #allocation4 [shape = 's32[1]{0}', space=sflag, size = 0x4, scoped, tag = 'scoped memory for tpu_custom_call.1']
    #allocation5 [shape = 'u8[16384]{0}', space=vmem, size = 0x4000, scoped, tag = 'input window, operand 1, single buffered']
    #allocation6 [shape = 's32[1]{0}', space=sflag, size = 0x4, scoped, tag = 'scoped memory for tpu_custom_call.1']
    #allocation7 [shape = 'u8[4096]{0}', space=vmem, size = 0x1000, scoped, tag = 'output window, operand 0, single buffered']
    %7 = vsyncpa [#allocation3], 0
    %8 = vsyncpa [#allocation6], 0
    %9 = vsyncpa [#allocation4], 0
    // Predicated region
    $region2: #{tpu_custom_call.1} parent=1 // pred_check
      _
    $region3: #{tpu_custom_call.1} parent=1 // pred_check_branch
      %11 = sbr.rel (0) target = $region5
    $region4: #{tpu_custom_call.1} parent=1 // pred_region
      %13 = vsyncadd [#allocation3], 0
      %s15 = sshll.u32 %s0, 4
      %s16 = int_to_ptr.hbm [resolvable:$true] %s15
      %s17 = sshll.u32 [#allocation2], 4
      %s18 = int_to_ptr.vmem [resolvable:$true] %s17
      %20 = dma.hbm_to_vmem [thread:$0]  %s16, 128, %s18, [#allocation3]
    $region5: #{tpu_custom_call.1} parent=1 // pred_fallthru
      _
    // Predicated region
    $region6: #{tpu_custom_call.1} parent=1 // pred_check
      _
    $region7: #{tpu_custom_call.1} parent=1 // pred_check_branch
      %22 = sbr.rel (0) target = $region9
    $region8: #{tpu_custom_call.1} parent=1 // pred_region
      %24 = vsyncadd [#allocation6], 0
      %s25 = sshll.u32 %s1, 4
      %s26 = int_to_ptr.hbm [resolvable:$true] %s25
      %s27 = sshll.u32 [#allocation5], 4
      %s28 = int_to_ptr.vmem [resolvable:$true] %s27
      %33 = dma.hbm_to_vmem [thread:$0]  %s26, 512, %s28, [#allocation6], 128, 128, 8
    $region9: #{tpu_custom_call.1} parent=1 // pred_fallthru
      _
    // Predicated region
    $region10: #{tpu_custom_call.1} parent=1 // pred_check
      _
    $region11: #{tpu_custom_call.1} parent=1 // pred_check_branch
      %35 = sbr.rel (0) target = $region13
    $region12: #{tpu_custom_call.1} parent=1 // pred_region
      %37 = dma.done [#allocation3], 128
    $region13: #{tpu_custom_call.1} parent=1 // pred_fallthru
      _
    // Predicated region
    $region14: #{tpu_custom_call.1} parent=1 // pred_check
      _
    $region15: #{tpu_custom_call.1} parent=1 // pred_check_branch
      %39 = sbr.rel (0) target = $region17
    $region16: #{tpu_custom_call.1} parent=1 // pred_region
      %41 = dma.done [#allocation6], 512
    $region17: #{tpu_custom_call.1} parent=1 // pred_fallthru
      _
    %v42 = vld [vmem:[#allocation2] sm:$0xff]
    %v43 = vld [vmem:[#allocation5] sm:$0xff]
    %v44 = vld [vmem:[#allocation5 + $0x8] sm:$0xff]
    %v45 = vld [vmem:[#allocation5 + $0x10] sm:$0xff]
    %v46 = vld [vmem:[#allocation5 + $0x18] sm:$0xff]
    %v47 = vmul.f32 %v42, %v42
    %vm48 = vcmask 261120
    %v49 = vsel %vm48, %v47, 0.0
    %50 = vadd.xlane.f32.xlu0 %v49
    %v51 = vpop.xlane.xlu0 %50
    %v52 = vmax.f32 %v51, 1e-24
    %v53 = vrsqrt.pop %v52
    %v54 = vmul.f32 %v53, %v52
    %v55 = vmul.f32 %v54, %v53
    %v56 = vmul.f32 0.5, %v55
    %v57 = vsub.f32 1.5, %v56
    %v58 = vmul.f32 %v53, %v57
    %vm59 = vweird.f32 %v52
    %vm60 = vweird.f32 %v53
    %vm61 = vmor %vm59, %vm60
    %v62 = vsel %vm61, %v53, %v58
    %v63 = vmul.f32 %v43, %v43
    %v64 = vmul.f32 %v44, %v44
    %v65 = vmul.f32 %v45, %v45
    %v66 = vmul.f32 %v46, %v46
    %v67 = vadd.f32 %v63, %v64
    %v68 = vadd.f32 %v67, %v65
    %v69 = vadd.f32 %v68, %v66
    %v70 = vrot.slane %v69, 4
    %v71 = vadd.f32 %v69, %v70
    %v72 = vrot.slane %v71, 2
    %v73 = vadd.f32 %v71, %v72
    %v74 = vrot.slane %v73, 1
    %v75 = vadd.f32 %v73, %v74
    %v76 = vmax.f32 %v75, 1e-24
    %v77 = vrsqrt.pop %v76
    %v78 = vmul.f32 %v77, %v76
    %v79 = vmul.f32 %v78, %v77
    %v80 = vmul.f32 0.5, %v79
    %v81 = vsub.f32 1.5, %v80
    %v82 = vmul.f32 %v77, %v81
    %vm83 = vweird.f32 %v76
    %vm84 = vweird.f32 %v77
    %vm85 = vmor %vm83, %vm84
    %v86 = vsel %vm85, %v77, %v82
    %v88 = vsel %vm48, %v42, 0
    %90 = vmatpush.msra.mxu0 0.0
    %91 = vmatpush.msra.mxu0 0.0
    %92 = vmatpush.msra.mxu0 0.0
    %93 = vmatpush.msra.mxu0 0.0
    %94 = vmatpush.msra.mxu0 0.0
    %95 = vmatpush.msra.mxu0 0.0
    %96 = vmatpush.msra.mxu0 0.0
    %97 = vmatpush.msra.mxu0 0.0
    %98 = vmatpush.msra.mxu0 0.0
    %99 = vmatpush.msra.mxu0 0.0
    %100 = vmatpush.msra.mxu0 0.0
    %101 = vmatpush.msra.mxu0 0.0
    %102 = vmatpush.msra.mxu0 %v46
    %103 = vmatpush.msra.mxu0 %v45
    %104 = vmatpush.msra.mxu0 %v44
    %105 = vmatpush.msra.mxu0 %v43
    %106 = vmatmul.f32.gmra.mxu0 %v88
    %v107 = vpop.f32.mrf.mxu0
    %v108 = vadd.f32 0.0, %v107
    %109 = vdwg.mxu0
    %v110 = vmul.f32 %v108, %v62
    %v111 = vmul.f32 %v110, %v86
    %112 = vst [vmem:[#allocation7] sm:$0xff] %v111
    // Predicated region
    $region18: #{tpu_custom_call.1} parent=1 // pred_check
      _
    $region19: #{tpu_custom_call.1} parent=1 // pred_check_branch
      %114 = sbr.rel (0) target = $region21
    $region20: #{tpu_custom_call.1} parent=1 // pred_region
      %116 = vsyncadd [#allocation4], 0
      %s118 = sshll.u32 [#allocation7], 4
      %s119 = int_to_ptr.vmem [resolvable:$true] %s118
      %s120 = sshll.u32 %s2, 4
      %s121 = int_to_ptr.hbm [resolvable:$true] %s120
      %123 = dma.vmem_to_hbm [thread:$0]  %s119, 128, %s121, [#allocation4]
    $region21: #{tpu_custom_call.1} parent=1 // pred_fallthru
      _
    // Predicated region
    $region22: #{tpu_custom_call.1} parent=1 // pred_check
      _
    $region23: #{tpu_custom_call.1} parent=1 // pred_check_branch
      %125 = sbr.rel (0) target = $region25
    $region24: #{tpu_custom_call.1} parent=1 // pred_region
      %127 = dma.done [#allocation4], 128
    $region25: #{tpu_custom_call.1} parent=1 // pred_fallthru
      _
    %128 = vsyncpa [#allocation3], 1
    %129 = vsyncpa [#allocation6], 1
    %130 = vsyncpa [#allocation4], 1

</llo_original>
